<compile_context>
chip_gen: v7x
topology: tpu7x:2x2x1
jax: 0.10.0
libtpu: 0.0.40
codegen_flags: <defaults>
</compile_context>

<pallas_src>
import functools

import jax
import jax.numpy as jnp
import numpy as np
from jax.experimental import pallas as pl
from jax.experimental.pallas import tpu as pltpu

EPS = 1e-5


# --------------------------- fused kernel ------------------------------------

def _bn(x, gamma, beta):
    """BatchNorm1d, training-mode batch stats (biased variance), single pass."""
    mean = jnp.mean(x, axis=0, keepdims=True)
    msq = jnp.mean(x * x, axis=0, keepdims=True)
    var = msq - mean * mean
    return (x - mean) * jax.lax.rsqrt(var + EPS) * gamma + beta
    # TODO(synk): if the reference Net is run in eval() mode, switch to
    # running-mean/var (extra two rows in the weight slab).


def fused_net_kernel(v_ref, a_ref, w_ref, out_a_ref, out_b_ref,
                     *, layout, num_layers, n_nodes, d):
    f32 = jnp.float32
    dot = functools.partial(jnp.dot, preferred_element_type=f32)

    def L(name):  # static-slice view into the packed weight slab
        r0, r1, c = layout[name]
        return w_ref[r0:r1, 0:c]

    # ---- hoisted, loop-invariant weight/bias loads (one VMEM slab) ----
    emb_wt, emb_b = L("emb_wt"), L("emb_b")
    emb_g, emb_be = L("emb_g"), L("emb_be")
    wfold, whh_t = L("wfold"), L("whh_t")          # (3D,3D), (D,3D)
    b_i, b_h = L("b_i"), L("b_h")                  # (1,3D) each
    kern_g, kern_be = L("kern_g"), L("kern_be")
    hw1t, hb1 = L("hw1t"), L("hb1")
    hg, hbe = L("hg"), L("hbe")
    hw2, hb2 = L("hw2"), L("hb2")

    v = v_ref[...]                                  # (N, F)
    a = a_ref[...]                                  # (3N, N): [A_0; A_1; A_2]

    # ---- Embedding: relu(BN(v @ Wemb^T + b)) ----
    output = jnp.maximum(_bn(dot(v, emb_wt) + emb_b, emb_g, emb_be), 0.0)

    n = n_nodes

    def gate_input(out_prev):
        # one aggregation matmul for all 3 relations ...
        ax = dot(a, out_prev)                                       # (3N, D)
        # ... then re-pack the sublane slabs into a lane layout so the folded
        # relation+input-gate transform is a single matmul.
        ax_lane = jnp.concatenate([ax[0:n], ax[n:2 * n], ax[2 * n:3 * n]],
                                  axis=1)                            # (N, 3D)
        return dot(ax_lane, wfold) + b_i                             # (N, 3D)

    def gates(gi, ghb):
        # PyTorch GRU gate order r, z, n; b_hn stays inside the r-gated term.
        r = jax.nn.sigmoid(gi[:, 0:d] + ghb[:, 0:d])
        z = jax.nn.sigmoid(gi[:, d:2 * d] + ghb[:, d:2 * d])
        c = jnp.tanh(gi[:, 2 * d:3 * d] + r * ghb[:, 2 * d:3 * d])
        return z, c

    # ---- layer 0 peeled: h_prev == 0 -> no hidden-side matmul, no z*h ----
    gi0 = gate_input(output)
    z0, c0 = gates(gi0, b_h)                       # h @ Whh == 0, only biases
    h = (1.0 - z0) * c0
    output = h                                     # nn.GRU(seq=1): output == h'

    # ---- remaining layers (statically unrolled) ----
    for _ in range(num_layers - 1):
        gi = gate_input(output)
        ghb = dot(h, whh_t) + b_h                  # one full-width hidden dot
        z, c = gates(gi, ghb)
        h = (1.0 - z) * c + z * h
        output = h

    # ---- final BatchNorm on GRU output ----
    h_final = _bn(output, kern_g, kern_be)

    # ---- fused task_a / task_b heads (one wide slab, split into 2 outputs) ----
    x1 = jnp.maximum(_bn(dot(h_final, hw1t) + hb1, hg, hbe), 0.0)    # (N, 2D)
    out = dot(x1, hw2) + hb2                                         # (N, oa+ob)
    oa = out_a_ref.shape[1]
    out_a_ref[...] = out[:, 0:oa]
    out_b_ref[...] = out[:, oa:oa + out_b_ref.shape[1]]


# --------------------------- wrapper ------------------------------------------

def net_forward(w_slab, v, a_vs, *, layout, num_layers, out_a, out_b):
    """Single fused pallas_call (3 input DMAs). Returns (x_a, x_b)."""
    n = v.shape[0]
    d = layout["emb_wt"][2]

    kernel = functools.partial(fused_net_kernel, layout=layout,
                               num_layers=num_layers, n_nodes=n, d=d)

    vmem = pl.BlockSpec(memory_space=pltpu.MemorySpace.VMEM)
    x_a, x_b = pl.pallas_call(
        kernel,
        out_shape=(jax.ShapeDtypeStruct((n, out_a), jnp.float32),
                   jax.ShapeDtypeStruct((n, out_b), jnp.float32)),
        in_specs=[vmem, vmem, vmem],
        out_specs=(vmem, vmem),
    )(v, a_vs, w_slab)
    return x_a, x_b


# --------------------------- parameter init / packing -------------------------

def _kaiming_uniform(key, shape, fan_in):
    bound = float(np.sqrt(6.0 / fan_in))
    return jax.random.uniform(key, shape, jnp.float32, -bound, bound)


def _linear_bias(key, shape, fan_in):
    bound = float(1.0 / np.sqrt(fan_in))
    return jax.random.uniform(key, shape, jnp.float32, -bound, bound)


def init_params(key, in_feats=16, h_dims=16, out_a=2, out_b=16):
    keys = jax.random.split(key, 16)
    D = h_dims
    gru_bound = float(1.0 / np.sqrt(D))

    def u(k, shape):
        return jax.random.uniform(k, shape, jnp.float32, -gru_bound, gru_bound)

    return {
        # Embedding
        "emb_w": _kaiming_uniform(keys[0], (D, in_feats), in_feats),
        "emb_b": _linear_bias(keys[1], (1, D), in_feats),
        "emb_gamma": jnp.ones((1, D), jnp.float32),
        "emb_beta": jnp.zeros((1, D), jnp.float32),
        # RGCNGRU
        "rel_w": _kaiming_uniform(keys[2], (3, D, D), D),   # used as x @ W_r
        "gru_wih": u(keys[3], (3 * D, D)),
        "gru_whh": u(keys[4], (3 * D, D)),
        "gru_bih": u(keys[5], (1, 3 * D)),
        "gru_bhh": u(keys[6], (1, 3 * D)),
        "kern_gamma": jnp.ones((1, D), jnp.float32),
        "kern_beta": jnp.zeros((1, D), jnp.float32),
        # task_a MLP
        "ta_w1": _kaiming_uniform(keys[7], (D, D), D),
        "ta_b1": _linear_bias(keys[8], (1, D), D),
        "ta_gamma": jnp.ones((1, D), jnp.float32),
        "ta_beta": jnp.zeros((1, D), jnp.float32),
        "ta_w2": _kaiming_uniform(keys[9], (out_a, D), D),
        "ta_b2": _linear_bias(keys[10], (1, out_a), D),
        # task_b MLP
        "tb_w1": _kaiming_uniform(keys[11], (D, D), D),
        "tb_b1": _linear_bias(keys[12], (1, D), D),
        "tb_gamma": jnp.ones((1, D), jnp.float32),
        "tb_beta": jnp.zeros((1, D), jnp.float32),
        "tb_w2": _kaiming_uniform(keys[13], (out_b, D), D),
        "tb_b2": _linear_bias(keys[14], (1, out_b), D),
    }


def pack_params(p, *, out_a, out_b):
    """One-time host-side repack into a single weight slab + row layout.

    * nn.Linear / GRU weights are transposed for x @ W form.
    * rel_w (raw (3, in, out) Parameter used as x @ W_r) keeps its orientation
      and is folded into the GRU input-gate weights: wfold_r = W_r @ W_ih^T.
    * task_a / task_b heads are fused (concat first layer, block-diag second).
    * Everything is stacked along rows of one (rows, 3D) f32 slab; matrix
      blocks are 8-row aligned so static slices never cross tile rows.
    """
    D = int(p["emb_w"].shape[0])
    W = 3 * D

    emb_wt = np.asarray(p["emb_w"]).T                       # (F, D)
    wih_t = np.asarray(p["gru_wih"]).T                      # (D, 3D) cols r|z|n
    whh_t = np.asarray(p["gru_whh"]).T                      # (D, 3D)
    rel = np.asarray(p["rel_w"])                            # (3, D, D)
    wfold = np.concatenate([rel[r] @ wih_t for r in range(3)], axis=0)  # (3D,3D)

    hw1t = np.concatenate([np.asarray(p["ta_w1"]).T,
                           np.asarray(p["tb_w1"]).T], axis=1)           # (D, 2D)
    hw2 = np.zeros((2 * D, out_a + out_b), np.float32)
    hw2[:D, :out_a] = np.asarray(p["ta_w2"]).T
    hw2[D:, out_a:] = np.asarray(p["tb_w2"]).T

    vec = lambda x: np.asarray(x, np.float32).reshape(1, -1)
    pieces = [
        ("emb_wt", emb_wt), ("whh_t", whh_t), ("wfold", wfold),
        ("hw1t", hw1t), ("hw2", hw2),
        ("emb_b", vec(p["emb_b"])), ("emb_g", vec(p["emb_gamma"])),
        ("emb_be", vec(p["emb_beta"])),
        ("b_i", vec(p["gru_bih"])), ("b_h", vec(p["gru_bhh"])),
        ("kern_g", vec(p["kern_gamma"])), ("kern_be", vec(p["kern_beta"])),
        ("hb1", np.concatenate([vec(p["ta_b1"]), vec(p["tb_b1"])], axis=1)),
        ("hg", np.concatenate([vec(p["ta_gamma"]), vec(p["tb_gamma"])], axis=1)),
        ("hbe", np.concatenate([vec(p["ta_beta"]), vec(p["tb_beta"])], axis=1)),
        ("hb2", np.concatenate([vec(p["ta_b2"]), vec(p["tb_b2"])], axis=1)),
    ]

    layout, rows, r = {}, [], 0
    for name, arr in pieces:
        arr = np.asarray(arr, np.float32)
        nr, nc = arr.shape
        if nr > 1:                                  # 8-row align matrix blocks
            pad = (-r) % 8
            if pad:
                rows.append(np.zeros((pad, W), np.float32))
                r += pad
        assert nc <= W, (name, nc, W)
        block = np.zeros((nr, W), np.float32)
        block[:, :nc] = arr
        layout[name] = (r, r + nr, nc)
        rows.append(block)
        r += nr

    slab = jnp.asarray(np.concatenate(rows, axis=0))         # (~139, 3D) f32
    return slab, layout


def build_graph(n_nodes=8):
    """Ring graph: fwd edges (rel 0), bwd edges (rel 1), self loops (rel 2).
    norm = 1 / in_degree(dst). Returns dense A[rel, dst, src]."""
    edges = []
    for i in range(n_nodes):
        edges.append((i, (i + 1) % n_nodes, 0))
        edges.append(((i + 1) % n_nodes, i, 1))
        edges.append((i, i, 2))
    in_deg = np.zeros(n_nodes, np.float32)
    for _, dst, _ in edges:
        in_deg[dst] += 1.0
    A = np.zeros((3, n_nodes, n_nodes), np.float32)
    for src, dst, rel in edges:
        A[rel, dst, src] += 1.0 / in_deg[dst]
    return jnp.asarray(A)


# TODO(synk): if N grows beyond a few hundred nodes (or multiple graphs are
# batched along the sublane axis), add a node-axis grid with BlockSpec tiling
# (weights resident, A streamed as [tile_dst, N] stripes) marked "parallel" for
# v7x's 2 TensorCores, a cross-tile two-pass BatchNorm, and size the stripe
# double buffers against v7x's 64 MiB VMEM / v5e's 16 MiB scoped default
# (set vmem_limit_bytes explicitly). At N=8 a grid is pure overhead.

# --------------------------- main ---------------------------------------------

if __name__ == "__main__":
    N_NODES, IN_FEATS, H_DIMS, OUT_A, OUT_B, NUM_LAYERS = 8, 16, 16, 2, 16, 2

    key = jax.random.PRNGKey(0)
    k_param, k_data = jax.random.split(key)

    params = init_params(k_param, in_feats=IN_FEATS, h_dims=H_DIMS,
                         out_a=OUT_A, out_b=OUT_B)
    w_slab, layout = pack_params(params, out_a=OUT_A, out_b=OUT_B)

    v = jax.random.normal(k_data, (N_NODES, IN_FEATS), jnp.float32)  # g.ndata['v']
    A = build_graph(N_NODES)                       # (3, N, N)
    a_vs = A.reshape(3 * N_NODES, N_NODES)         # [A_0; A_1; A_2]

    x_a, x_b = net_forward(w_slab, v, a_vs, layout=layout,
                           num_layers=NUM_LAYERS, out_a=OUT_A, out_b=OUT_B)
    x_a = jax.block_until_ready(x_a)
    x_b = jax.block_until_ready(x_b)

    assert x_a.shape == (N_NODES, OUT_A) and x_b.shape == (N_NODES, OUT_B)
    assert bool(jnp.all(jnp.isfinite(x_a))) and bool(jnp.all(jnp.isfinite(x_b)))
    print("KERNEL_OK")
</pallas_src>

<mosaic_0001>
module attributes {stable_mosaic.version = 11 : i64} {
  func.func @fused_net_kernel(%arg0: memref<8x16xf32, #tpu.memory_space<vmem>>, %arg1: memref<24x8xf32, #tpu.memory_space<vmem>>, %arg2: memref<139x48xf32, #tpu.memory_space<vmem>>, %arg3: memref<8x2xf32, #tpu.memory_space<vmem>>, %arg4: memref<8x16xf32, #tpu.memory_space<vmem>>) attributes {dimension_semantics = [], scalar_prefetch = 0 : i64, scratch_operands = 0 : i64, tpu.core_type = #tpu.core_type<tc>} {
    %c0 = arith.constant 0 : index
    %c0_0 = arith.constant 0 : index
    %0 = vector.load %arg2[%c0, %c0_0] : memref<139x48xf32, #tpu.memory_space<vmem>>, vector<16x16xf32>
    %c128 = arith.constant 128 : index
    %c0_1 = arith.constant 0 : index
    %1 = vector.load %arg2[%c128, %c0_1] : memref<139x48xf32, #tpu.memory_space<vmem>>, vector<1x16xf32>
    %c129 = arith.constant 129 : index
    %c0_2 = arith.constant 0 : index
    %2 = vector.load %arg2[%c129, %c0_2] : memref<139x48xf32, #tpu.memory_space<vmem>>, vector<1x16xf32>
    %c130 = arith.constant 130 : index
    %c0_3 = arith.constant 0 : index
    %3 = vector.load %arg2[%c130, %c0_3] : memref<139x48xf32, #tpu.memory_space<vmem>>, vector<1x16xf32>
    %c32 = arith.constant 32 : index
    %c0_4 = arith.constant 0 : index
    %4 = vector.load %arg2[%c32, %c0_4] : memref<139x48xf32, #tpu.memory_space<vmem>>, vector<48x48xf32>
    %c16 = arith.constant 16 : index
    %c0_5 = arith.constant 0 : index
    %5 = vector.load %arg2[%c16, %c0_5] : memref<139x48xf32, #tpu.memory_space<vmem>>, vector<16x48xf32>
    %c131 = arith.constant 131 : index
    %c0_6 = arith.constant 0 : index
    %6 = vector.load %arg2[%c131, %c0_6] : memref<139x48xf32, #tpu.memory_space<vmem>>, vector<1x48xf32>
    %c132 = arith.constant 132 : index
    %c0_7 = arith.constant 0 : index
    %7 = vector.load %arg2[%c132, %c0_7] : memref<139x48xf32, #tpu.memory_space<vmem>>, vector<1x48xf32>
    %c133 = arith.constant 133 : index
    %c0_8 = arith.constant 0 : index
    %8 = vector.load %arg2[%c133, %c0_8] : memref<139x48xf32, #tpu.memory_space<vmem>>, vector<1x16xf32>
    %c134 = arith.constant 134 : index
    %c0_9 = arith.constant 0 : index
    %9 = vector.load %arg2[%c134, %c0_9] : memref<139x48xf32, #tpu.memory_space<vmem>>, vector<1x16xf32>
    %c80 = arith.constant 80 : index
    %c0_10 = arith.constant 0 : index
    %10 = vector.load %arg2[%c80, %c0_10] : memref<139x48xf32, #tpu.memory_space<vmem>>, vector<16x32xf32>
    %c135 = arith.constant 135 : index
    %c0_11 = arith.constant 0 : index
    %11 = vector.load %arg2[%c135, %c0_11] : memref<139x48xf32, #tpu.memory_space<vmem>>, vector<1x32xf32>
    %c136 = arith.constant 136 : index
    %c0_12 = arith.constant 0 : index
    %12 = vector.load %arg2[%c136, %c0_12] : memref<139x48xf32, #tpu.memory_space<vmem>>, vector<1x32xf32>
    %c137 = arith.constant 137 : index
    %c0_13 = arith.constant 0 : index
    %13 = vector.load %arg2[%c137, %c0_13] : memref<139x48xf32, #tpu.memory_space<vmem>>, vector<1x32xf32>
    %c96 = arith.constant 96 : index
    %c0_14 = arith.constant 0 : index
    %14 = vector.load %arg2[%c96, %c0_14] : memref<139x48xf32, #tpu.memory_space<vmem>>, vector<32x18xf32>
    %c138 = arith.constant 138 : index
    %c0_15 = arith.constant 0 : index
    %15 = vector.load %arg2[%c138, %c0_15] : memref<139x48xf32, #tpu.memory_space<vmem>>, vector<1x18xf32>
    %c0_16 = arith.constant 0 : index
    %c0_17 = arith.constant 0 : index
    %16 = vector.load %arg0[%c0_16, %c0_17] : memref<8x16xf32, #tpu.memory_space<vmem>>, vector<8x16xf32>
    %c0_18 = arith.constant 0 : index
    %c0_19 = arith.constant 0 : index
    %17 = vector.load %arg1[%c0_18, %c0_19] : memref<24x8xf32, #tpu.memory_space<vmem>>, vector<24x8xf32>
    %cst = arith.constant dense<0.000000e+00> : vector<8x16xf32>
    %18 = tpu.matmul %16, %0, %cst {dimension_numbers = #tpu.dot_dimension_numbers<[1], [0], [0], [1], [0, 0, 1, 1], [], []>} : vector<8x16xf32>, vector<16x16xf32>, vector<8x16xf32> -> vector<8x16xf32>
    %19 = vector.broadcast %1 : vector<1x16xf32> to vector<8x16xf32>
    %20 = arith.addf %18, %19 : vector<8x16xf32>
    %cst_20 = arith.constant dense<0.000000e+00> : vector<16xf32>
    %21 = vector.multi_reduction <add>, %20, %cst_20 [0] : vector<8x16xf32> to vector<16xf32>
    %22 = vector.shape_cast %21 : vector<16xf32> to vector<1x16xf32>
    %cst_21 = arith.constant 8.000000e+00 : f32
    %23 = vector.broadcast %cst_21 : f32 to vector<1x16xf32>
    %24 = arith.divf %22, %23 : vector<1x16xf32>
    %25 = arith.mulf %20, %20 : vector<8x16xf32>
    %cst_22 = arith.constant dense<0.000000e+00> : vector<16xf32>
    %26 = vector.multi_reduction <add>, %25, %cst_22 [0] : vector<8x16xf32> to vector<16xf32>
    %27 = vector.shape_cast %26 : vector<16xf32> to vector<1x16xf32>
    %cst_23 = arith.constant 8.000000e+00 : f32
    %28 = vector.broadcast %cst_23 : f32 to vector<1x16xf32>
    %29 = arith.divf %27, %28 : vector<1x16xf32>
    %30 = arith.mulf %24, %24 : vector<1x16xf32>
    %31 = arith.subf %29, %30 : vector<1x16xf32>
    %32 = vector.broadcast %24 : vector<1x16xf32> to vector<8x16xf32>
    %33 = arith.subf %20, %32 : vector<8x16xf32>
    %cst_24 = arith.constant 9.99999974E-6 : f32
    %34 = vector.broadcast %cst_24 : f32 to vector<1x16xf32>
    %35 = arith.addf %31, %34 : vector<1x16xf32>
    %36 = math.rsqrt %35 : vector<1x16xf32>
    %37 = vector.broadcast %36 : vector<1x16xf32> to vector<8x16xf32>
    %38 = arith.mulf %33, %37 : vector<8x16xf32>
    %39 = vector.broadcast %2 : vector<1x16xf32> to vector<8x16xf32>
    %40 = arith.mulf %38, %39 : vector<8x16xf32>
    %41 = vector.broadcast %3 : vector<1x16xf32> to vector<8x16xf32>
    %42 = arith.addf %40, %41 : vector<8x16xf32>
    %cst_25 = arith.constant 0.000000e+00 : f32
    %43 = vector.broadcast %cst_25 : f32 to vector<8x16xf32>
    %44 = arith.maximumf %42, %43 : vector<8x16xf32>
    %cst_26 = arith.constant dense<0.000000e+00> : vector<24x16xf32>
    %45 = tpu.matmul %17, %44, %cst_26 {dimension_numbers = #tpu.dot_dimension_numbers<[1], [0], [0], [1], [0, 0, 1, 1], [], []>} : vector<24x8xf32>, vector<8x16xf32>, vector<24x16xf32> -> vector<24x16xf32>
    %46 = vector.extract_strided_slice %45 {offsets = [0, 0], sizes = [8, 16], strides = [1, 1]} : vector<24x16xf32> to vector<8x16xf32>
    %47 = vector.extract_strided_slice %45 {offsets = [8, 0], sizes = [8, 16], strides = [1, 1]} : vector<24x16xf32> to vector<8x16xf32>
    %48 = vector.extract_strided_slice %45 {offsets = [16, 0], sizes = [8, 16], strides = [1, 1]} : vector<24x16xf32> to vector<8x16xf32>
    %49 = tpu.concatenate %46, %47, %48 in 1 : vector<8x16xf32>, vector<8x16xf32>, vector<8x16xf32> -> vector<8x48xf32>
    %cst_27 = arith.constant dense<0.000000e+00> : vector<8x48xf32>
    %50 = tpu.matmul %49, %4, %cst_27 {dimension_numbers = #tpu.dot_dimension_numbers<[1], [0], [0], [1], [0, 0, 1, 1], [], []>} : vector<8x48xf32>, vector<48x48xf32>, vector<8x48xf32> -> vector<8x48xf32>
    %51 = vector.broadcast %6 : vector<1x48xf32> to vector<8x48xf32>
    %52 = arith.addf %50, %51 : vector<8x48xf32>
    %53 = vector.extract_strided_slice %52 {offsets = [0, 0], sizes = [8, 16], strides = [1, 1]} : vector<8x48xf32> to vector<8x16xf32>
    %54 = vector.extract_strided_slice %7 {offsets = [0, 0], sizes = [1, 16], strides = [1, 1]} : vector<1x48xf32> to vector<1x16xf32>
    %55 = vector.broadcast %54 : vector<1x16xf32> to vector<8x16xf32>
    %56 = arith.addf %53, %55 : vector<8x16xf32>
    %57 = arith.negf %56 : vector<8x16xf32>
    %58 = math.exp %57 : vector<8x16xf32>
    %cst_28 = arith.constant 1.000000e+00 : f32
    %59 = vector.broadcast %cst_28 : f32 to vector<8x16xf32>
    %60 = arith.addf %59, %58 : vector<8x16xf32>
    %61 = arith.divf %59, %60 : vector<8x16xf32>
    %62 = vector.extract_strided_slice %52 {offsets = [0, 16], sizes = [8, 16], strides = [1, 1]} : vector<8x48xf32> to vector<8x16xf32>
    %63 = vector.extract_strided_slice %7 {offsets = [0, 16], sizes = [1, 16], strides = [1, 1]} : vector<1x48xf32> to vector<1x16xf32>
    %64 = vector.broadcast %63 : vector<1x16xf32> to vector<8x16xf32>
    %65 = arith.addf %62, %64 : vector<8x16xf32>
    %66 = arith.negf %65 : vector<8x16xf32>
    %67 = math.exp %66 : vector<8x16xf32>
    %cst_29 = arith.constant 1.000000e+00 : f32
    %68 = vector.broadcast %cst_29 : f32 to vector<8x16xf32>
    %69 = arith.addf %68, %67 : vector<8x16xf32>
    %70 = arith.divf %68, %69 : vector<8x16xf32>
    %71 = vector.extract_strided_slice %52 {offsets = [0, 32], sizes = [8, 16], strides = [1, 1]} : vector<8x48xf32> to vector<8x16xf32>
    %72 = vector.extract_strided_slice %7 {offsets = [0, 32], sizes = [1, 16], strides = [1, 1]} : vector<1x48xf32> to vector<1x16xf32>
    %73 = vector.broadcast %72 : vector<1x16xf32> to vector<8x16xf32>
    %74 = arith.mulf %61, %73 : vector<8x16xf32>
    %75 = arith.addf %71, %74 : vector<8x16xf32>
    %76 = math.tanh %75 : vector<8x16xf32>
    %cst_30 = arith.constant 1.000000e+00 : f32
    %77 = vector.broadcast %cst_30 : f32 to vector<8x16xf32>
    %78 = arith.subf %77, %70 : vector<8x16xf32>
    %79 = arith.mulf %78, %76 : vector<8x16xf32>
    %cst_31 = arith.constant dense<0.000000e+00> : vector<24x16xf32>
    %80 = tpu.matmul %17, %79, %cst_31 {dimension_numbers = #tpu.dot_dimension_numbers<[1], [0], [0], [1], [0, 0, 1, 1], [], []>} : vector<24x8xf32>, vector<8x16xf32>, vector<24x16xf32> -> vector<24x16xf32>
    %81 = vector.extract_strided_slice %80 {offsets = [0, 0], sizes = [8, 16], strides = [1, 1]} : vector<24x16xf32> to vector<8x16xf32>
    %82 = vector.extract_strided_slice %80 {offsets = [8, 0], sizes = [8, 16], strides = [1, 1]} : vector<24x16xf32> to vector<8x16xf32>
    %83 = vector.extract_strided_slice %80 {offsets = [16, 0], sizes = [8, 16], strides = [1, 1]} : vector<24x16xf32> to vector<8x16xf32>
    %84 = tpu.concatenate %81, %82, %83 in 1 : vector<8x16xf32>, vector<8x16xf32>, vector<8x16xf32> -> vector<8x48xf32>
    %cst_32 = arith.constant dense<0.000000e+00> : vector<8x48xf32>
    %85 = tpu.matmul %84, %4, %cst_32 {dimension_numbers = #tpu.dot_dimension_numbers<[1], [0], [0], [1], [0, 0, 1, 1], [], []>} : vector<8x48xf32>, vector<48x48xf32>, vector<8x48xf32> -> vector<8x48xf32>
    %86 = vector.broadcast %6 : vector<1x48xf32> to vector<8x48xf32>
    %87 = arith.addf %85, %86 : vector<8x48xf32>
    %cst_33 = arith.constant dense<0.000000e+00> : vector<8x48xf32>
    %88 = tpu.matmul %79, %5, %cst_33 {dimension_numbers = #tpu.dot_dimension_numbers<[1], [0], [0], [1], [0, 0, 1, 1], [], []>} : vector<8x16xf32>, vector<16x48xf32>, vector<8x48xf32> -> vector<8x48xf32>
    %89 = vector.broadcast %7 : vector<1x48xf32> to vector<8x48xf32>
    %90 = arith.addf %88, %89 : vector<8x48xf32>
    %91 = vector.extract_strided_slice %87 {offsets = [0, 0], sizes = [8, 16], strides = [1, 1]} : vector<8x48xf32> to vector<8x16xf32>
    %92 = vector.extract_strided_slice %90 {offsets = [0, 0], sizes = [8, 16], strides = [1, 1]} : vector<8x48xf32> to vector<8x16xf32>
    %93 = arith.addf %91, %92 : vector<8x16xf32>
    %94 = arith.negf %93 : vector<8x16xf32>
    %95 = math.exp %94 : vector<8x16xf32>
    %cst_34 = arith.constant 1.000000e+00 : f32
    %96 = vector.broadcast %cst_34 : f32 to vector<8x16xf32>
    %97 = arith.addf %96, %95 : vector<8x16xf32>
    %98 = arith.divf %96, %97 : vector<8x16xf32>
    %99 = vector.extract_strided_slice %87 {offsets = [0, 16], sizes = [8, 16], strides = [1, 1]} : vector<8x48xf32> to vector<8x16xf32>
    %100 = vector.extract_strided_slice %90 {offsets = [0, 16], sizes = [8, 16], strides = [1, 1]} : vector<8x48xf32> to vector<8x16xf32>
    %101 = arith.addf %99, %100 : vector<8x16xf32>
    %102 = arith.negf %101 : vector<8x16xf32>
    %103 = math.exp %102 : vector<8x16xf32>
    %cst_35 = arith.constant 1.000000e+00 : f32
    %104 = vector.broadcast %cst_35 : f32 to vector<8x16xf32>
    %105 = arith.addf %104, %103 : vector<8x16xf32>
    %106 = arith.divf %104, %105 : vector<8x16xf32>
    %107 = vector.extract_strided_slice %87 {offsets = [0, 32], sizes = [8, 16], strides = [1, 1]} : vector<8x48xf32> to vector<8x16xf32>
    %108 = vector.extract_strided_slice %90 {offsets = [0, 32], sizes = [8, 16], strides = [1, 1]} : vector<8x48xf32> to vector<8x16xf32>
    %109 = arith.mulf %98, %108 : vector<8x16xf32>
    %110 = arith.addf %107, %109 : vector<8x16xf32>
    %111 = math.tanh %110 : vector<8x16xf32>
    %cst_36 = arith.constant 1.000000e+00 : f32
    %112 = vector.broadcast %cst_36 : f32 to vector<8x16xf32>
    %113 = arith.subf %112, %106 : vector<8x16xf32>
    %114 = arith.mulf %113, %111 : vector<8x16xf32>
    %115 = arith.mulf %106, %79 : vector<8x16xf32>
    %116 = arith.addf %114, %115 : vector<8x16xf32>
    %cst_37 = arith.constant dense<0.000000e+00> : vector<16xf32>
    %117 = vector.multi_reduction <add>, %116, %cst_37 [0] : vector<8x16xf32> to vector<16xf32>
    %118 = vector.shape_cast %117 : vector<16xf32> to vector<1x16xf32>
    %cst_38 = arith.constant 8.000000e+00 : f32
    %119 = vector.broadcast %cst_38 : f32 to vector<1x16xf32>
    %120 = arith.divf %118, %119 : vector<1x16xf32>
    %121 = arith.mulf %116, %116 : vector<8x16xf32>
    %cst_39 = arith.constant dense<0.000000e+00> : vector<16xf32>
    %122 = vector.multi_reduction <add>, %121, %cst_39 [0] : vector<8x16xf32> to vector<16xf32>
    %123 = vector.shape_cast %122 : vector<16xf32> to vector<1x16xf32>
    %cst_40 = arith.constant 8.000000e+00 : f32
    %124 = vector.broadcast %cst_40 : f32 to vector<1x16xf32>
    %125 = arith.divf %123, %124 : vector<1x16xf32>
    %126 = arith.mulf %120, %120 : vector<1x16xf32>
    %127 = arith.subf %125, %126 : vector<1x16xf32>
    %128 = vector.broadcast %120 : vector<1x16xf32> to vector<8x16xf32>
    %129 = arith.subf %116, %128 : vector<8x16xf32>
    %cst_41 = arith.constant 9.99999974E-6 : f32
    %130 = vector.broadcast %cst_41 : f32 to vector<1x16xf32>
    %131 = arith.addf %127, %130 : vector<1x16xf32>
    %132 = math.rsqrt %131 : vector<1x16xf32>
    %133 = vector.broadcast %132 : vector<1x16xf32> to vector<8x16xf32>
    %134 = arith.mulf %129, %133 : vector<8x16xf32>
    %135 = vector.broadcast %8 : vector<1x16xf32> to vector<8x16xf32>
    %136 = arith.mulf %134, %135 : vector<8x16xf32>
    %137 = vector.broadcast %9 : vector<1x16xf32> to vector<8x16xf32>
    %138 = arith.addf %136, %137 : vector<8x16xf32>
    %cst_42 = arith.constant dense<0.000000e+00> : vector<8x32xf32>
    %139 = tpu.matmul %138, %10, %cst_42 {dimension_numbers = #tpu.dot_dimension_numbers<[1], [0], [0], [1], [0, 0, 1, 1], [], []>} : vector<8x16xf32>, vector<16x32xf32>, vector<8x32xf32> -> vector<8x32xf32>
    %140 = vector.broadcast %11 : vector<1x32xf32> to vector<8x32xf32>
    %141 = arith.addf %139, %140 : vector<8x32xf32>
    %cst_43 = arith.constant dense<0.000000e+00> : vector<32xf32>
    %142 = vector.multi_reduction <add>, %141, %cst_43 [0] : vector<8x32xf32> to vector<32xf32>
    %143 = vector.shape_cast %142 : vector<32xf32> to vector<1x32xf32>
    %cst_44 = arith.constant 8.000000e+00 : f32
    %144 = vector.broadcast %cst_44 : f32 to vector<1x32xf32>
    %145 = arith.divf %143, %144 : vector<1x32xf32>
    %146 = arith.mulf %141, %141 : vector<8x32xf32>
    %cst_45 = arith.constant dense<0.000000e+00> : vector<32xf32>
    %147 = vector.multi_reduction <add>, %146, %cst_45 [0] : vector<8x32xf32> to vector<32xf32>
    %148 = vector.shape_cast %147 : vector<32xf32> to vector<1x32xf32>
    %cst_46 = arith.constant 8.000000e+00 : f32
    %149 = vector.broadcast %cst_46 : f32 to vector<1x32xf32>
    %150 = arith.divf %148, %149 : vector<1x32xf32>
    %151 = arith.mulf %145, %145 : vector<1x32xf32>
    %152 = arith.subf %150, %151 : vector<1x32xf32>
    %153 = vector.broadcast %145 : vector<1x32xf32> to vector<8x32xf32>
    %154 = arith.subf %141, %153 : vector<8x32xf32>
    %cst_47 = arith.constant 9.99999974E-6 : f32
    %155 = vector.broadcast %cst_47 : f32 to vector<1x32xf32>
    %156 = arith.addf %152, %155 : vector<1x32xf32>
    %157 = math.rsqrt %156 : vector<1x32xf32>
    %158 = vector.broadcast %157 : vector<1x32xf32> to vector<8x32xf32>
    %159 = arith.mulf %154, %158 : vector<8x32xf32>
    %160 = vector.broadcast %12 : vector<1x32xf32> to vector<8x32xf32>
    %161 = arith.mulf %159, %160 : vector<8x32xf32>
    %162 = vector.broadcast %13 : vector<1x32xf32> to vector<8x32xf32>
    %163 = arith.addf %161, %162 : vector<8x32xf32>
    %cst_48 = arith.constant 0.000000e+00 : f32
    %164 = vector.broadcast %cst_48 : f32 to vector<8x32xf32>
    %165 = arith.maximumf %163, %164 : vector<8x32xf32>
    %cst_49 = arith.constant dense<0.000000e+00> : vector<8x18xf32>
    %166 = tpu.matmul %165, %14, %cst_49 {dimension_numbers = #tpu.dot_dimension_numbers<[1], [0], [0], [1], [0, 0, 1, 1], [], []>} : vector<8x32xf32>, vector<32x18xf32>, vector<8x18xf32> -> vector<8x18xf32>
    %167 = vector.broadcast %15 : vector<1x18xf32> to vector<8x18xf32>
    %168 = arith.addf %166, %167 : vector<8x18xf32>
    %169 = vector.extract_strided_slice %168 {offsets = [0, 0], sizes = [8, 2], strides = [1, 1]} : vector<8x18xf32> to vector<8x2xf32>
    %c0_50 = arith.constant 0 : index
    %c0_51 = arith.constant 0 : index
    %170 = vector.load %arg3[%c0_50, %c0_51] : memref<8x2xf32, #tpu.memory_space<vmem>>, vector<8x2xf32>
    tpu.vector_store %arg3[%c0_50, %c0_51], %169 {strides = array<i32>} : memref<8x2xf32, #tpu.memory_space<vmem>>, vector<8x2xf32>,
    %171 = vector.extract_strided_slice %168 {offsets = [0, 2], sizes = [8, 16], strides = [1, 1]} : vector<8x18xf32> to vector<8x16xf32>
    %c0_52 = arith.constant 0 : index
    %c0_53 = arith.constant 0 : index
    %172 = vector.load %arg4[%c0_52, %c0_53] : memref<8x16xf32, #tpu.memory_space<vmem>>, vector<8x16xf32>
    tpu.vector_store %arg4[%c0_52, %c0_53], %171 {strides = array<i32>} : memref<8x16xf32, #tpu.memory_space<vmem>>, vector<8x16xf32>,
    return
  }
}

</mosaic_0001>

<llo_original>
// kernel: tpu_custom_call.1
$region0: #{tpu_custom_call.1}
  #allocation0 [shape = 'u32[]', space=smem, size = 0x4, offset = 0x4, fixed_abs, tag = 'smem constant byte address 0x4 - core index']
  #allocation1 [shape = 'u32[144,128]{1,0:T(1,128)}', space=vmem, size = 0x12000, scoped, tag = 'internal scratch']
  %s0 = inlined_call_operand.vmem [shape: f32[8,16], index: 0, kind: input, shape index: {}]
  %s1 = inlined_call_operand.vmem [shape: f32[24,8], index: 1, kind: input, shape index: {}]
  %s2 = inlined_call_operand.vmem [shape: f32[139,48], index: 2, kind: input, shape index: {}]
  %s3 = inlined_call_operand.vmem [shape: f32[8,2], index: 3, kind: output, shape index: {0}]
  %s4 = inlined_call_operand.hbm [shape: f32[8,16], index: 4, kind: output, shape index: {1}]
  %5 = xla_tuple %s3, %s4
  %s6 = sld [smem:[#allocation0]]
  $region30: #{tpu_custom_call.1} parent=0
    _
  %s8 = ssub.s32 1, %s6
  %s9 = scalar_select 0, %s8, %s6
  $region1: #{tpu_custom_call.1} parent=0
    #allocation2 [shape = 'u8[4096]{0}', space=vmem, size = 0x1000, scoped, tag = 'output window, operand 1, single buffered']
    #allocation3 [shape = 's32[1]{0}', space=sflag, size = 0x4, scoped, tag = 'scoped memory for tpu_custom_call.1']
    %10 = vsyncpa [#allocation3], 0
    // Predicated region
    $region2: #{tpu_custom_call.1} parent=1 // pred_check
      _
    $region3: #{tpu_custom_call.1} parent=1 // pred_check_branch
      %12 = sbr.rel (0) target = $region5
    $region4: #{tpu_custom_call.1} parent=1 // pred_region
      _
    $region5: #{tpu_custom_call.1} parent=1 // pred_fallthru
      _
    // Predicated region
    $region6: #{tpu_custom_call.1} parent=1 // pred_check
      _
    $region7: #{tpu_custom_call.1} parent=1 // pred_check_branch
      %14 = sbr.rel (0) target = $region9
    $region8: #{tpu_custom_call.1} parent=1 // pred_region
      _
    $region9: #{tpu_custom_call.1} parent=1 // pred_fallthru
      _
    // Predicated region
    $region10: #{tpu_custom_call.1} parent=1 // pred_check
      _
    $region11: #{tpu_custom_call.1} parent=1 // pred_check_branch
      %16 = sbr.rel (0) target = $region13
    $region12: #{tpu_custom_call.1} parent=1 // pred_region
      _
    $region13: #{tpu_custom_call.1} parent=1 // pred_fallthru
      _
    %v17 = vld [vmem:[%s2] sm:$0xff]
    %v18 = vld [vmem:[%s2 + $0x8] sm:$0xff]
    %v19 = vld [vmem:[%s2 + $0x80] sm:$0x1]
    %v20 = vld [vmem:[%s2 + $0x81] sm:$0x1]
    %v21 = vld [vmem:[%s2 + $0x82] sm:$0x1]
    %v22 = vld [vmem:[%s2 + $0x20] sm:$0xff]
    %v23 = vld [vmem:[%s2 + $0x28] sm:$0xff]
    %v24 = vld [vmem:[%s2 + $0x30] sm:$0xff]
    %v25 = vld [vmem:[%s2 + $0x38] sm:$0xff]
    %v26 = vld [vmem:[%s2 + $0x40] sm:$0xff]
    %v27 = vld [vmem:[%s2 + $0x48] sm:$0xff]
    %v28 = vld [vmem:[%s2 + $0x10] sm:$0xff]
    %v29 = vld [vmem:[%s2 + $0x18] sm:$0xff]
    %v30 = vld [vmem:[%s2 + $0x83] sm:$0x1]
    %v31 = vld [vmem:[%s2 + $0x84] sm:$0x1]
    %v32 = vld [vmem:[%s2 + $0x85] sm:$0x1]
    %v33 = vld [vmem:[%s2 + $0x86] sm:$0x1]
    %v34 = vld [vmem:[%s2 + $0x50] sm:$0xff]
    %v35 = vld [vmem:[%s2 + $0x58] sm:$0xff]
    %v36 = vld [vmem:[%s2 + $0x87] sm:$0x1]
    %v37 = vld [vmem:[%s2 + $0x88] sm:$0x1]
    %v38 = vld [vmem:[%s2 + $0x89] sm:$0x1]
    %v39 = vld [vmem:[%s2 + $0x60] sm:$0xff]
    %v40 = vld [vmem:[%s2 + $0x68] sm:$0xff]
    %v41 = vld [vmem:[%s2 + $0x70] sm:$0xff]
    %v42 = vld [vmem:[%s2 + $0x78] sm:$0xff]
    %v43 = vld [vmem:[%s2 + $0x8a] sm:$0x1]
    %v44 = vld [vmem:[%s0] sm:$0xff]
    %v45 = vld [vmem:[%s1] sm:$0xff]
    %v46 = vld [vmem:[%s1 + $0x8] sm:$0xff]
    %v47 = vld [vmem:[%s1 + $0x10] sm:$0xff]
    %v48 = vlaneseq
    %v49 = vshrl.u32 %v48, 7
    %v50 = vsub.s32 0, %v49
    %v51 = vrot.slane %v19, %v50
    %vm52 = vcmask 130048
    %v54 = vsel %vm52, %v44, 0
    %56 = vmatprep.subr.mxu0 0.0
    %57 = vmatpush1.msra.mxu0 %v17
    %58 = vmatprep.subr.mxu0 0.0
    %59 = vmatpush1.msra.mxu0 %v18
    %60 = vmatprep.subr.mxu0 0.0
    %61 = vmatpush1.msra.mxu0 0.0
    %62 = vmatprep.subr.mxu0 0.0
    %63 = vmatpush1.msra.mxu0 0.0
    %64 = vmatprep.subr.mxu0 0.0
    %65 = vmatpush1.msra.mxu0 0.0
    %66 = vmatprep.subr.mxu0 0.0
    %67 = vmatpush1.msra.mxu0 0.0
    %68 = vmatprep.subr.mxu0 0.0
    %69 = vmatpush1.msra.mxu0 0.0
    %70 = vmatprep.subr.mxu0 0.0
    %71 = vmatpush1.msra.mxu0 0.0
    %72 = vmatprep.subr.mxu0 0.0
    %73 = vmatpush1.msra.mxu0 0.0
    %74 = vmatprep.subr.mxu0 0.0
    %75 = vmatpush1.msra.mxu0 0.0
    %76 = vmatprep.subr.mxu0 0.0
    %77 = vmatpush1.msra.mxu0 0.0
    %78 = vmatprep.subr.mxu0 0.0
    %79 = vmatpush1.msra.mxu0 0.0
    %80 = vmatprep.subr.mxu0 0.0
    %81 = vmatpush1.msra.mxu0 0.0
    %82 = vmatprep.subr.mxu0 0.0
    %83 = vmatpush1.msra.mxu0 0.0
    %84 = vmatprep.subr.mxu0 0.0
    %85 = vmatpush1.msra.mxu0 0.0
    %86 = vmatprep.subr.mxu0 0.0
    %87 = vmatpush1.msra.mxu0 0.0
    %88 = vmatprep.subr.mxu0 0.0
    %89 = vmatpush1.msra.mxu0 0.0
    %90 = vmatprep.subr.mxu0 0.0
    %91 = vmatpush1.msra.mxu0 0.0
    %92 = vmatprep.subr.mxu0 0.0
    %93 = vmatpush1.msra.mxu0 0.0
    %94 = vmatprep.subr.mxu0 0.0
    %95 = vmatpush1.msra.mxu0 0.0
    %96 = vmatprep.subr.mxu0 0.0
    %97 = vmatpush1.msra.mxu0 0.0
    %98 = vmatprep.subr.mxu0 0.0
    %99 = vmatpush1.msra.mxu0 0.0
    %100 = vmatprep.subr.mxu0 0.0
    %101 = vmatpush1.msra.mxu0 0.0
    %102 = vmatprep.subr.mxu0 0.0
    %103 = vmatpush1.msra.mxu0 0.0
    %104 = vmatprep.subr.mxu0 0.0
    %105 = vmatpush1.msra.mxu0 0.0
    %106 = vmatprep.subr.mxu0 0.0
    %107 = vmatpush1.msra.mxu0 0.0
    %108 = vmatprep.subr.mxu0 0.0
    %109 = vmatpush1.msra.mxu0 0.0
    %110 = vmatprep.subr.mxu0 0.0
    %111 = vmatpush1.msra.mxu0 0.0
    %112 = vmatprep.subr.mxu0 0.0
    %113 = vmatpush1.msra.mxu0 0.0
    %114 = vmatprep.subr.mxu0 0.0
    %115 = vmatpush1.msra.mxu0 0.0
    %116 = vmatprep.subr.mxu0 0.0
    %117 = vmatpush1.msra.mxu0 0.0
    %118 = vmatprep.subr.mxu0 0.0
    %119 = vmatpush1.msra.mxu0 0.0
    %120 = vmatprep.mubr.f32.mxu0 0.0
    %121 = vmatmul.mubr.f32.gmra.mrb[0].mxu0 %v54
    %v122 = vpop.f32.mrb[0].mxu0
    %v123 = vadd.f32 %v51, %v122
    %v124 = vpop.f32.mrb[0].mxu0
    %125 = vdwg.mxu0
    %v126 = vsel %vm52, %v123, 0.0
    %v127 = vrot.slane %v126, 4
    %v128 = vadd.f32 %v126, %v127
    %v129 = vrot.slane %v128, 2
    %v130 = vadd.f32 %v128, %v129
    %v131 = vrot.slane %v130, 1
    %v132 = vadd.f32 %v130, %v131
    %v133 = vrcp.pop 8.0
    %v134 = vmul.f32 %v132, %v133
    %v135 = vmul.f32 %v123, %v123
    %v136 = vsel %vm52, %v135, 0.0
    %v137 = vrot.slane %v136, 4
    %v138 = vadd.f32 %v136, %v137
    %v139 = vrot.slane %v138, 2
    %v140 = vadd.f32 %v138, %v139
    %v141 = vrot.slane %v140, 1
    %v142 = vadd.f32 %v140, %v141
    %v143 = vmul.f32 %v142, %v133
    %v144 = vmul.f32 %v134, %v134
    %v145 = vsub.f32 %v143, %v144
    %v146 = vsub.f32 %v123, %v134
    %v147 = vadd.f32 %v145, 1e-05
    %v148 = vrsqrt.pop %v147
    %v149 = vmul.f32 %v146, %v148
    %v150 = vlaneseq
    %v151 = vshrl.u32 %v150, 7
    %v152 = vsub.s32 0, %v151
    %v153 = vrot.slane %v20, %v152
    %v154 = vmul.f32 %v149, %v153
    %v155 = vlaneseq
    %v156 = vshrl.u32 %v155, 7
    %v157 = vsub.s32 0, %v156
    %v158 = vrot.slane %v21, %v157
    %v159 = vadd.f32 %v154, %v158
    %v160 = vmax.f32 %v159, 0.0
    %vm161 = vcmask 64512
    %v163 = vsel %vm161, %v45, 0
    %v166 = vsel %vm161, %v46, 0
    %v169 = vsel %vm161, %v47, 0
    %171 = vmatprep.subr.mxu0 0.0
    %172 = vmatpush1.msra.mxu0 %v160
    %173 = vmatprep.subr.mxu0 0.0
    %174 = vmatpush1.msra.mxu0 0.0
    %175 = vmatprep.subr.mxu0 0.0
    %176 = vmatpush1.msra.mxu0 0.0
    %177 = vmatprep.subr.mxu0 0.0
    %178 = vmatpush1.msra.mxu0 0.0
    %179 = vmatprep.subr.mxu0 0.0
    %180 = vmatpush1.msra.mxu0 0.0
    %181 = vmatprep.subr.mxu0 0.0
    %182 = vmatpush1.msra.mxu0 0.0
    %183 = vmatprep.subr.mxu0 0.0
    %184 = vmatpush1.msra.mxu0 0.0
    %185 = vmatprep.subr.mxu0 0.0
    %186 = vmatpush1.msra.mxu0 0.0
    %187 = vmatprep.subr.mxu0 0.0
    %188 = vmatpush1.msra.mxu0 0.0
    %189 = vmatprep.subr.mxu0 0.0
    %190 = vmatpush1.msra.mxu0 0.0
    %191 = vmatprep.subr.mxu0 0.0
    %192 = vmatpush1.msra.mxu0 0.0
    %193 = vmatprep.subr.mxu0 0.0
    %194 = vmatpush1.msra.mxu0 0.0
    %195 = vmatprep.subr.mxu0 0.0
    %196 = vmatpush1.msra.mxu0 0.0
    %197 = vmatprep.subr.mxu0 0.0
    %198 = vmatpush1.msra.mxu0 0.0
    %199 = vmatprep.subr.mxu0 0.0
    %200 = vmatpush1.msra.mxu0 0.0
    %201 = vmatprep.subr.mxu0 0.0
    %202 = vmatpush1.msra.mxu0 0.0
    %203 = vmatprep.subr.mxu0 0.0
    %204 = vmatpush1.msra.mxu0 0.0
    %205 = vmatprep.subr.mxu0 0.0
    %206 = vmatpush1.msra.mxu0 0.0
    %207 = vmatprep.subr.mxu0 0.0
    %208 = vmatpush1.msra.mxu0 0.0
    %209 = vmatprep.subr.mxu0 0.0
    %210 = vmatpush1.msra.mxu0 0.0
    %211 = vmatprep.subr.mxu0 0.0
    %212 = vmatpush1.msra.mxu0 0.0
    %213 = vmatprep.subr.mxu0 0.0
    %214 = vmatpush1.msra.mxu0 0.0
    %215 = vmatprep.subr.mxu0 0.0
    %216 = vmatpush1.msra.mxu0 0.0
    %217 = vmatprep.subr.mxu0 0.0
    %218 = vmatpush1.msra.mxu0 0.0
    %219 = vmatprep.subr.mxu0 0.0
    %220 = vmatpush1.msra.mxu0 0.0
    %221 = vmatprep.subr.mxu0 0.0
    %222 = vmatpush1.msra.mxu0 0.0
    %223 = vmatprep.subr.mxu0 0.0
    %224 = vmatpush1.msra.mxu0 0.0
    %225 = vmatprep.subr.mxu0 0.0
    %226 = vmatpush1.msra.mxu0 0.0
    %227 = vmatprep.subr.mxu0 0.0
    %228 = vmatpush1.msra.mxu0 0.0
    %229 = vmatprep.subr.mxu0 0.0
    %230 = vmatpush1.msra.mxu0 0.0
    %231 = vmatprep.subr.mxu0 0.0
    %232 = vmatpush1.msra.mxu0 0.0
    %233 = vmatprep.subr.mxu0 0.0
    %234 = vmatpush1.msra.mxu0 0.0
    %235 = vmatprep.mubr.f32.mxu0 0.0
    %236 = vmatmul.mubr.f32.gmra.mrb[0].mxu0 %v163
    %v237 = vpop.f32.mrb[0].mxu0
    %v238 = vadd.f32 0.0, %v237
    %v239 = vpop.f32.mrb[0].mxu0
    %240 = vmatprep.mubr.f32.mxu0 0.0
    %241 = vmatmul.mubr.f32.gmra.mrb[0].mxu0 %v166
    %v242 = vpop.f32.mrb[0].mxu0
    %v243 = vadd.f32 0.0, %v242
    %v244 = vpop.f32.mrb[0].mxu0
    %245 = vmatprep.mubr.f32.mxu0 0.0
    %246 = vmatmul.mubr.f32.gmra.mrb[0].mxu0 %v169
    %v247 = vpop.f32.mrb[0].mxu0
    %v248 = vadd.f32 0.0, %v247
    %v249 = vpop.f32.mrb[0].mxu0
    %250 = vdwg.mxu0
    %252 = vrot.lane.b32.xlu0 %v243, 16
    %v253 = vpop.permute.xlu0 %252
    %256 = vrot.lane.b32.xlu0 %v248, 32
    %v257 = vpop.permute.xlu0 %256
    %v259 = vsel %vm52, %v238, %v253
    %vm260 = vcmask 261120
    %v261 = vsel %vm260, %v259, %v257
    %v262 = vlaneseq
    %v263 = vshrl.u32 %v262, 7
    %v264 = vsub.s32 0, %v263
    %v265 = vrot.slane %v30, %v264
    %vm266 = vcmask 392192
    %v268 = vsel %vm266, %v261, 0
    %270 = vmatprep.subr.mxu0 0.0
    %271 = vmatpush1.msra.mxu0 %v22
    %272 = vmatprep.subr.mxu0 0.0
    %273 = vmatpush1.msra.mxu0 %v23
    %274 = vmatprep.subr.mxu0 0.0
    %275 = vmatpush1.msra.mxu0 %v24
    %276 = vmatprep.subr.mxu0 0.0
    %277 = vmatpush1.msra.mxu0 %v25
    %278 = vmatprep.subr.mxu0 0.0
    %279 = vmatpush1.msra.mxu0 %v26
    %280 = vmatprep.subr.mxu0 0.0
    %281 = vmatpush1.msra.mxu0 %v27
    %282 = vmatprep.subr.mxu0 0.0
    %283 = vmatpush1.msra.mxu0 0.0
    %284 = vmatprep.subr.mxu0 0.0
    %285 = vmatpush1.msra.mxu0 0.0
    %286 = vmatprep.subr.mxu0 0.0
    %287 = vmatpush1.msra.mxu0 0.0
    %288 = vmatprep.subr.mxu0 0.0
    %289 = vmatpush1.msra.mxu0 0.0
    %290 = vmatprep.subr.mxu0 0.0
    %291 = vmatpush1.msra.mxu0 0.0
    %292 = vmatprep.subr.mxu0 0.0
    %293 = vmatpush1.msra.mxu0 0.0
    %294 = vmatprep.subr.mxu0 0.0
    %295 = vmatpush1.msra.mxu0 0.0
    %296 = vmatprep.subr.mxu0 0.0
    %297 = vmatpush1.msra.mxu0 0.0
    %298 = vmatprep.subr.mxu0 0.0
    %299 = vmatpush1.msra.mxu0 0.0
    %300 = vmatprep.subr.mxu0 0.0
    %301 = vmatpush1.msra.mxu0 0.0
    %302 = vmatprep.subr.mxu0 0.0
    %303 = vmatpush1.msra.mxu0 0.0
    %304 = vmatprep.subr.mxu0 0.0
    %305 = vmatpush1.msra.mxu0 0.0
    %306 = vmatprep.subr.mxu0 0.0
    %307 = vmatpush1.msra.mxu0 0.0
    %308 = vmatprep.subr.mxu0 0.0
    %309 = vmatpush1.msra.mxu0 0.0
    %310 = vmatprep.subr.mxu0 0.0
    %311 = vmatpush1.msra.mxu0 0.0
    %312 = vmatprep.subr.mxu0 0.0
    %313 = vmatpush1.msra.mxu0 0.0
    %314 = vmatprep.subr.mxu0 0.0
    %315 = vmatpush1.msra.mxu0 0.0
    %316 = vmatprep.subr.mxu0 0.0
    %317 = vmatpush1.msra.mxu0 0.0
    %318 = vmatprep.subr.mxu0 0.0
    %319 = vmatpush1.msra.mxu0 0.0
    %320 = vmatprep.subr.mxu0 0.0
    %321 = vmatpush1.msra.mxu0 0.0
    %322 = vmatprep.subr.mxu0 0.0
    %323 = vmatpush1.msra.mxu0 0.0
    %324 = vmatprep.subr.mxu0 0.0
    %325 = vmatpush1.msra.mxu0 0.0
    %326 = vmatprep.subr.mxu0 0.0
    %327 = vmatpush1.msra.mxu0 0.0
    %328 = vmatprep.subr.mxu0 0.0
    %329 = vmatpush1.msra.mxu0 0.0
    %330 = vmatprep.subr.mxu0 0.0
    %331 = vmatpush1.msra.mxu0 0.0
    %332 = vmatprep.subr.mxu0 0.0
    %333 = vmatpush1.msra.mxu0 0.0
    %334 = vmatprep.mubr.f32.mxu0 0.0
    %335 = vmatmul.mubr.f32.gmra.mrb[0].mxu0 %v268
    %v336 = vpop.f32.mrb[0].mxu0
    %v337 = vadd.f32 %v265, %v336
    %v338 = vpop.f32.mrb[0].mxu0
    %339 = vdwg.mxu0
    %v340 = vlaneseq
    %v341 = vshrl.u32 %v340, 7
    %v342 = vsub.s32 0, %v341
    %v343 = vrot.slane %v31, %v342
    %v344 = vadd.f32 %v337, %v343
    %v345 = vxor.u32 %v344, 2147483648
    %v346 = vmul.f32 %v345, 1.442695
    %v347 = vpow.pop %v346
    %v348 = vadd.f32 %v347, 1.0
    %v349 = vrcp.pop %v348
    %v350 = vmul.f32 1.0, %v349
    %352 = vrot.lane.b32.xlu0 %v343, 96
    %v353 = vpop.permute.xlu0 %352
    %v355 = vmul.f32 %v350, %v353
    %357 = vrot.lane.b32.xlu0 %v355, 32
    %v358 = vpop.permute.xlu0 %357
    %v360 = vadd.f32 %v337, %v358
    %v361 = vtanh.pop %v360
    %v362 = vsub.f32 1.0, %v350
    %364 = vrot.lane.b32.xlu0 %v361, 112
    %v365 = vpop.permute.xlu0 %364
    %v367 = vmul.f32 %v362, %v365
    %369 = vrot.lane.b32.xlu0 %v367, 112
    %v370 = vpop.permute.xlu0 %369
    %372 = vmatprep.subr.mxu0 0.0
    %373 = vmatpush1.msra.mxu0 %v370
    %374 = vmatprep.subr.mxu0 0.0
    %375 = vmatpush1.msra.mxu0 0.0
    %376 = vmatprep.subr.mxu0 0.0
    %377 = vmatpush1.msra.mxu0 0.0
    %378 = vmatprep.subr.mxu0 0.0
    %379 = vmatpush1.msra.mxu0 0.0
    %380 = vmatprep.subr.mxu0 0.0
    %381 = vmatpush1.msra.mxu0 0.0
    %382 = vmatprep.subr.mxu0 0.0
    %383 = vmatpush1.msra.mxu0 0.0
    %384 = vmatprep.subr.mxu0 0.0
    %385 = vmatpush1.msra.mxu0 0.0
    %386 = vmatprep.subr.mxu0 0.0
    %387 = vmatpush1.msra.mxu0 0.0
    %388 = vmatprep.subr.mxu0 0.0
    %389 = vmatpush1.msra.mxu0 0.0
    %390 = vmatprep.subr.mxu0 0.0
    %391 = vmatpush1.msra.mxu0 0.0
    %392 = vmatprep.subr.mxu0 0.0
    %393 = vmatpush1.msra.mxu0 0.0
    %394 = vmatprep.subr.mxu0 0.0
    %395 = vmatpush1.msra.mxu0 0.0
    %396 = vmatprep.subr.mxu0 0.0
    %397 = vmatpush1.msra.mxu0 0.0
    %398 = vmatprep.subr.mxu0 0.0
    %399 = vmatpush1.msra.mxu0 0.0
    %400 = vmatprep.subr.mxu0 0.0
    %401 = vmatpush1.msra.mxu0 0.0
    %402 = vmatprep.subr.mxu0 0.0
    %403 = vmatpush1.msra.mxu0 0.0
    %404 = vmatprep.subr.mxu0 0.0
    %405 = vmatpush1.msra.mxu0 0.0
    %406 = vmatprep.subr.mxu0 0.0
    %407 = vmatpush1.msra.mxu0 0.0
    %408 = vmatprep.subr.mxu0 0.0
    %409 = vmatpush1.msra.mxu0 0.0
    %410 = vmatprep.subr.mxu0 0.0
    %411 = vmatpush1.msra.mxu0 0.0
    %412 = vmatprep.subr.mxu0 0.0
    %413 = vmatpush1.msra.mxu0 0.0
    %414 = vmatprep.subr.mxu0 0.0
    %415 = vmatpush1.msra.mxu0 0.0
    %416 = vmatprep.subr.mxu0 0.0
    %417 = vmatpush1.msra.mxu0 0.0
    %418 = vmatprep.subr.mxu0 0.0
    %419 = vmatpush1.msra.mxu0 0.0
    %420 = vmatprep.subr.mxu0 0.0
    %421 = vmatpush1.msra.mxu0 0.0
    %422 = vmatprep.subr.mxu0 0.0
    %423 = vmatpush1.msra.mxu0 0.0
    %424 = vmatprep.subr.mxu0 0.0
    %425 = vmatpush1.msra.mxu0 0.0
    %426 = vmatprep.subr.mxu0 0.0
    %427 = vmatpush1.msra.mxu0 0.0
    %428 = vmatprep.subr.mxu0 0.0
    %429 = vmatpush1.msra.mxu0 0.0
    %430 = vmatprep.subr.mxu0 0.0
    %431 = vmatpush1.msra.mxu0 0.0
    %432 = vmatprep.subr.mxu0 0.0
    %433 = vmatpush1.msra.mxu0 0.0
    %434 = vmatprep.subr.mxu0 0.0
    %435 = vmatpush1.msra.mxu0 0.0
    %436 = vmatprep.mubr.f32.mxu0 0.0
    %437 = vmatmul.mubr.f32.gmra.mrb[0].mxu0 %v163
    %v438 = vpop.f32.mrb[0].mxu0
    %v439 = vadd.f32 0.0, %v438
    %v440 = vpop.f32.mrb[0].mxu0
    %441 = vmatprep.mubr.f32.mxu0 0.0
    %442 = vmatmul.mubr.f32.gmra.mrb[0].mxu0 %v166
    %v443 = vpop.f32.mrb[0].mxu0
    %v444 = vadd.f32 0.0, %v443
    %v445 = vpop.f32.mrb[0].mxu0
    %446 = vmatprep.mubr.f32.mxu0 0.0
    %447 = vmatmul.mubr.f32.gmra.mrb[0].mxu0 %v169
    %v448 = vpop.f32.mrb[0].mxu0
    %v449 = vadd.f32 0.0, %v448
    %v450 = vpop.f32.mrb[0].mxu0
    %451 = vdwg.mxu0
    %453 = vrot.lane.b32.xlu0 %v444, 16
    %v454 = vpop.permute.xlu0 %453
    %457 = vrot.lane.b32.xlu0 %v449, 32
    %v458 = vpop.permute.xlu0 %457
    %v460 = vsel %vm52, %v439, %v454
    %v461 = vsel %vm260, %v460, %v458
    %v463 = vsel %vm266, %v461, 0
    %465 = vmatprep.subr.mxu0 0.0
    %466 = vmatpush1.msra.mxu0 %v22
    %467 = vmatprep.subr.mxu0 0.0
    %468 = vmatpush1.msra.mxu0 %v23
    %469 = vmatprep.subr.mxu0 0.0
    %470 = vmatpush1.msra.mxu0 %v24
    %471 = vmatprep.subr.mxu0 0.0
    %472 = vmatpush1.msra.mxu0 %v25
    %473 = vmatprep.subr.mxu0 0.0
    %474 = vmatpush1.msra.mxu0 %v26
    %475 = vmatprep.subr.mxu0 0.0
    %476 = vmatpush1.msra.mxu0 %v27
    %477 = vmatprep.subr.mxu0 0.0
    %478 = vmatpush1.msra.mxu0 0.0
    %479 = vmatprep.subr.mxu0 0.0
    %480 = vmatpush1.msra.mxu0 0.0
    %481 = vmatprep.subr.mxu0 0.0
    %482 = vmatpush1.msra.mxu0 0.0
    %483 = vmatprep.subr.mxu0 0.0
    %484 = vmatpush1.msra.mxu0 0.0
    %485 = vmatprep.subr.mxu0 0.0
    %486 = vmatpush1.msra.mxu0 0.0
    %487 = vmatprep.subr.mxu0 0.0
    %488 = vmatpush1.msra.mxu0 0.0
    %489 = vmatprep.subr.mxu0 0.0
    %490 = vmatpush1.msra.mxu0 0.0
    %491 = vmatprep.subr.mxu0 0.0
    %492 = vmatpush1.msra.mxu0 0.0
    %493 = vmatprep.subr.mxu0 0.0
    %494 = vmatpush1.msra.mxu0 0.0
    %495 = vmatprep.subr.mxu0 0.0
    %496 = vmatpush1.msra.mxu0 0.0
    %497 = vmatprep.subr.mxu0 0.0
    %498 = vmatpush1.msra.mxu0 0.0
    %499 = vmatprep.subr.mxu0 0.0
    %500 = vmatpush1.msra.mxu0 0.0
    %501 = vmatprep.subr.mxu0 0.0
    %502 = vmatpush1.msra.mxu0 0.0
    %503 = vmatprep.subr.mxu0 0.0
    %504 = vmatpush1.msra.mxu0 0.0
    %505 = vmatprep.subr.mxu0 0.0
    %506 = vmatpush1.msra.mxu0 0.0
    %507 = vmatprep.subr.mxu0 0.0
    %508 = vmatpush1.msra.mxu0 0.0
    %509 = vmatprep.subr.mxu0 0.0
    %510 = vmatpush1.msra.mxu0 0.0
    %511 = vmatprep.subr.mxu0 0.0
    %512 = vmatpush1.msra.mxu0 0.0
    %513 = vmatprep.subr.mxu0 0.0
    %514 = vmatpush1.msra.mxu0 0.0
    %515 = vmatprep.subr.mxu0 0.0
    %516 = vmatpush1.msra.mxu0 0.0
    %517 = vmatprep.subr.mxu0 0.0
    %518 = vmatpush1.msra.mxu0 0.0
    %519 = vmatprep.subr.mxu0 0.0
    %520 = vmatpush1.msra.mxu0 0.0
    %521 = vmatprep.subr.mxu0 0.0
    %522 = vmatpush1.msra.mxu0 0.0
    %523 = vmatprep.subr.mxu0 0.0
    %524 = vmatpush1.msra.mxu0 0.0
    %525 = vmatprep.subr.mxu0 0.0
    %526 = vmatpush1.msra.mxu0 0.0
    %527 = vmatprep.subr.mxu0 0.0
    %528 = vmatpush1.msra.mxu0 0.0
    %529 = vmatprep.mubr.f32.mxu0 0.0
    %530 = vmatmul.mubr.f32.gmra.mrb[0].mxu0 %v463
    %v531 = vpop.f32.mrb[0].mxu0
    %v532 = vadd.f32 %v265, %v531
    %v533 = vpop.f32.mrb[0].mxu0
    %534 = vdwg.mxu0
    %v535 = vsel %vm52, %v370, 0
    %537 = vmatprep.subr.mxu0 0.0
    %538 = vmatpush1.msra.mxu0 %v28
    %539 = vmatprep.subr.mxu0 0.0
    %540 = vmatpush1.msra.mxu0 %v29
    %541 = vmatprep.subr.mxu0 0.0
    %542 = vmatpush1.msra.mxu0 0.0
    %543 = vmatprep.subr.mxu0 0.0
    %544 = vmatpush1.msra.mxu0 0.0
    %545 = vmatprep.subr.mxu0 0.0
    %546 = vmatpush1.msra.mxu0 0.0
    %547 = vmatprep.subr.mxu0 0.0
    %548 = vmatpush1.msra.mxu0 0.0
    %549 = vmatprep.subr.mxu0 0.0
    %550 = vmatpush1.msra.mxu0 0.0
    %551 = vmatprep.subr.mxu0 0.0
    %552 = vmatpush1.msra.mxu0 0.0
    %553 = vmatprep.subr.mxu0 0.0
    %554 = vmatpush1.msra.mxu0 0.0
    %555 = vmatprep.subr.mxu0 0.0
    %556 = vmatpush1.msra.mxu0 0.0
    %557 = vmatprep.subr.mxu0 0.0
    %558 = vmatpush1.msra.mxu0 0.0
    %559 = vmatprep.subr.mxu0 0.0
    %560 = vmatpush1.msra.mxu0 0.0
    %561 = vmatprep.subr.mxu0 0.0
    %562 = vmatpush1.msra.mxu0 0.0
    %563 = vmatprep.subr.mxu0 0.0
    %564 = vmatpush1.msra.mxu0 0.0
    %565 = vmatprep.subr.mxu0 0.0
    %566 = vmatpush1.msra.mxu0 0.0
    %567 = vmatprep.subr.mxu0 0.0
    %568 = vmatpush1.msra.mxu0 0.0
    %569 = vmatprep.subr.mxu0 0.0
    %570 = vmatpush1.msra.mxu0 0.0
    %571 = vmatprep.subr.mxu0 0.0
    %572 = vmatpush1.msra.mxu0 0.0
    %573 = vmatprep.subr.mxu0 0.0
    %574 = vmatpush1.msra.mxu0 0.0
    %575 = vmatprep.subr.mxu0 0.0
    %576 = vmatpush1.msra.mxu0 0.0
    %577 = vmatprep.subr.mxu0 0.0
    %578 = vmatpush1.msra.mxu0 0.0
    %579 = vmatprep.subr.mxu0 0.0
    %580 = vmatpush1.msra.mxu0 0.0
    %581 = vmatprep.subr.mxu0 0.0
    %582 = vmatpush1.msra.mxu0 0.0
    %583 = vmatprep.subr.mxu0 0.0
    %584 = vmatpush1.msra.mxu0 0.0
    %585 = vmatprep.subr.mxu0 0.0
    %586 = vmatpush1.msra.mxu0 0.0
    %587 = vmatprep.subr.mxu0 0.0
    %588 = vmatpush1.msra.mxu0 0.0
    %589 = vmatprep.subr.mxu0 0.0
    %590 = vmatpush1.msra.mxu0 0.0
    %591 = vmatprep.subr.mxu0 0.0
    %592 = vmatpush1.msra.mxu0 0.0
    %593 = vmatprep.subr.mxu0 0.0
    %594 = vmatpush1.msra.mxu0 0.0
    %595 = vmatprep.subr.mxu0 0.0
    %596 = vmatpush1.msra.mxu0 0.0
    %597 = vmatprep.subr.mxu0 0.0
    %598 = vmatpush1.msra.mxu0 0.0
    %599 = vmatprep.subr.mxu0 0.0
    %600 = vmatpush1.msra.mxu0 0.0
    %601 = vmatprep.mubr.f32.mxu0 0.0
    %602 = vmatmul.mubr.f32.gmra.mrb[0].mxu0 %v535
    %v603 = vpop.f32.mrb[0].mxu0
    %v604 = vadd.f32 %v343, %v603
    %v605 = vpop.f32.mrb[0].mxu0
    %606 = vdwg.mxu0
    %v607 = vadd.f32 %v532, %v604
    %v608 = vxor.u32 %v607, 2147483648
    %v609 = vmul.f32 %v608, 1.442695
    %v610 = vpow.pop %v609
    %v611 = vadd.f32 %v610, 1.0
    %v612 = vrcp.pop %v611
    %v613 = vmul.f32 1.0, %v612
    %615 = vrot.lane.b32.xlu0 %v604, 96
    %v616 = vpop.permute.xlu0 %615
    %v618 = vmul.f32 %v613, %v616
    %620 = vrot.lane.b32.xlu0 %v618, 32
    %v621 = vpop.permute.xlu0 %620
    %v623 = vadd.f32 %v532, %v621
    %v624 = vtanh.pop %v623
    %v625 = vsub.f32 1.0, %v613
    %627 = vrot.lane.b32.xlu0 %v624, 112
    %v628 = vpop.permute.xlu0 %627
    %v630 = vmul.f32 %v625, %v628
    %v631 = vmul.f32 %v613, %v367
    %v632 = vadd.f32 %v630, %v631
    %vm633 = vcmask 261248
    %v634 = vsel %vm633, %v632, 0.0
    %v635 = vrot.slane %v634, 4
    %v636 = vadd.f32 %v634, %v635
    %v637 = vrot.slane %v636, 2
    %v638 = vadd.f32 %v636, %v637
    %v639 = vrot.slane %v638, 1
    %v640 = vadd.f32 %v638, %v639
    %v641 = vmul.f32 %v640, %v133
    %v642 = vmul.f32 %v632, %v632
    %v643 = vsel %vm633, %v642, 0.0
    %v644 = vrot.slane %v643, 4
    %v645 = vadd.f32 %v643, %v644
    %v646 = vrot.slane %v645, 2
    %v647 = vadd.f32 %v645, %v646
    %v648 = vrot.slane %v647, 1
    %v649 = vadd.f32 %v647, %v648
    %v650 = vmul.f32 %v649, %v133
    %v651 = vmul.f32 %v641, %v641
    %v652 = vsub.f32 %v650, %v651
    %v653 = vsub.f32 %v632, %v641
    %v654 = vadd.f32 %v652, 1e-05
    %v655 = vrsqrt.pop %v654
    %v656 = vmul.f32 %v653, %v655
    %v657 = vlaneseq
    %v658 = vshrl.u32 %v657, 7
    %v659 = vsub.s32 0, %v658
    %v660 = vrot.slane %v32, %v659
    %662 = vrot.lane.b32.xlu0 %v660, 16
    %v663 = vpop.permute.xlu0 %662
    %v665 = vmul.f32 %v656, %v663
    %v666 = vlaneseq
    %v667 = vshrl.u32 %v666, 7
    %v668 = vsub.s32 0, %v667
    %v669 = vrot.slane %v33, %v668
    %671 = vrot.lane.b32.xlu0 %v669, 16
    %v672 = vpop.permute.xlu0 %671
    %v674 = vadd.f32 %v665, %v672
    %v675 = vlaneseq
    %v676 = vshrl.u32 %v675, 7
    %v677 = vsub.s32 0, %v676
    %v678 = vrot.slane %v36, %v677
    %680 = vrot.lane.b32.xlu0 %v674, 112
    %v681 = vpop.permute.xlu0 %680
    %v682 = vsel %vm52, %v681, 0
    %684 = vmatprep.subr.mxu0 0.0
    %685 = vmatpush1.msra.mxu0 %v34
    %686 = vmatprep.subr.mxu0 0.0
    %687 = vmatpush1.msra.mxu0 %v35
    %688 = vmatprep.subr.mxu0 0.0
    %689 = vmatpush1.msra.mxu0 0.0
    %690 = vmatprep.subr.mxu0 0.0
    %691 = vmatpush1.msra.mxu0 0.0
    %692 = vmatprep.subr.mxu0 0.0
    %693 = vmatpush1.msra.mxu0 0.0
    %694 = vmatprep.subr.mxu0 0.0
    %695 = vmatpush1.msra.mxu0 0.0
    %696 = vmatprep.subr.mxu0 0.0
    %697 = vmatpush1.msra.mxu0 0.0
    %698 = vmatprep.subr.mxu0 0.0
    %699 = vmatpush1.msra.mxu0 0.0
    %700 = vmatprep.subr.mxu0 0.0
    %701 = vmatpush1.msra.mxu0 0.0
    %702 = vmatprep.subr.mxu0 0.0
    %703 = vmatpush1.msra.mxu0 0.0
    %704 = vmatprep.subr.mxu0 0.0
    %705 = vmatpush1.msra.mxu0 0.0
    %706 = vmatprep.subr.mxu0 0.0
    %707 = vmatpush1.msra.mxu0 0.0
    %708 = vmatprep.subr.mxu0 0.0
    %709 = vmatpush1.msra.mxu0 0.0
    %710 = vmatprep.subr.mxu0 0.0
    %711 = vmatpush1.msra.mxu0 0.0
    %712 = vmatprep.subr.mxu0 0.0
    %713 = vmatpush1.msra.mxu0 0.0
    %714 = vmatprep.subr.mxu0 0.0
    %715 = vmatpush1.msra.mxu0 0.0
    %716 = vmatprep.subr.mxu0 0.0
    %717 = vmatpush1.msra.mxu0 0.0
    %718 = vmatprep.subr.mxu0 0.0
    %719 = vmatpush1.msra.mxu0 0.0
    %720 = vmatprep.subr.mxu0 0.0
    %721 = vmatpush1.msra.mxu0 0.0
    %722 = vmatprep.subr.mxu0 0.0
    %723 = vmatpush1.msra.mxu0 0.0
    %724 = vmatprep.subr.mxu0 0.0
    %725 = vmatpush1.msra.mxu0 0.0
    %726 = vmatprep.subr.mxu0 0.0
    %727 = vmatpush1.msra.mxu0 0.0
    %728 = vmatprep.subr.mxu0 0.0
    %729 = vmatpush1.msra.mxu0 0.0
    %730 = vmatprep.subr.mxu0 0.0
    %731 = vmatpush1.msra.mxu0 0.0
    %732 = vmatprep.subr.mxu0 0.0
    %733 = vmatpush1.msra.mxu0 0.0
    %734 = vmatprep.subr.mxu0 0.0
    %735 = vmatpush1.msra.mxu0 0.0
    %736 = vmatprep.subr.mxu0 0.0
    %737 = vmatpush1.msra.mxu0 0.0
    %738 = vmatprep.subr.mxu0 0.0
    %739 = vmatpush1.msra.mxu0 0.0
    %740 = vmatprep.subr.mxu0 0.0
    %741 = vmatpush1.msra.mxu0 0.0
    %742 = vmatprep.subr.mxu0 0.0
    %743 = vmatpush1.msra.mxu0 0.0
    %744 = vmatprep.subr.mxu0 0.0
    %745 = vmatpush1.msra.mxu0 0.0
    %746 = vmatprep.subr.mxu0 0.0
    %747 = vmatpush1.msra.mxu0 0.0
    %748 = vmatprep.mubr.f32.mxu0 0.0
    %749 = vmatmul.mubr.f32.gmra.mrb[0].mxu0 %v682
    %v750 = vpop.f32.mrb[0].mxu0
    %v751 = vadd.f32 %v678, %v750
    %v752 = vpop.f32.mrb[0].mxu0
    %753 = vdwg.mxu0
    %v754 = vsel %vm260, %v751, 0.0
    %v755 = vrot.slane %v754, 4
    %v756 = vadd.f32 %v754, %v755
    %v757 = vrot.slane %v756, 2
    %v758 = vadd.f32 %v756, %v757
    %v759 = vrot.slane %v758, 1
    %v760 = vadd.f32 %v758, %v759
    %v761 = vmul.f32 %v760, %v133
    %v762 = vmul.f32 %v751, %v751
    %v763 = vsel %vm260, %v762, 0.0
    %v764 = vrot.slane %v763, 4
    %v765 = vadd.f32 %v763, %v764
    %v766 = vrot.slane %v765, 2
    %v767 = vadd.f32 %v765, %v766
    %v768 = vrot.slane %v767, 1
    %v769 = vadd.f32 %v767, %v768
    %v770 = vmul.f32 %v769, %v133
    %v771 = vmul.f32 %v761, %v761
    %v772 = vsub.f32 %v770, %v771
    %v773 = vsub.f32 %v751, %v761
    %v774 = vadd.f32 %v772, 1e-05
    %v775 = vrsqrt.pop %v774
    %v776 = vmul.f32 %v773, %v775
    %v777 = vlaneseq
    %v778 = vshrl.u32 %v777, 7
    %v779 = vsub.s32 0, %v778
    %v780 = vrot.slane %v37, %v779
    %v781 = vmul.f32 %v776, %v780
    %v782 = vlaneseq
    %v783 = vshrl.u32 %v782, 7
    %v784 = vsub.s32 0, %v783
    %v785 = vrot.slane %v38, %v784
    %v786 = vadd.f32 %v781, %v785
    %v787 = vmax.f32 %v786, 0.0
    %v788 = vlaneseq
    %v789 = vshrl.u32 %v788, 7
    %v790 = vsub.s32 0, %v789
    %v791 = vrot.slane %v43, %v790
    %v793 = vsel %vm260, %v787, 0
    %795 = vmatprep.subr.mxu0 0.0
    %796 = vmatpush1.msra.mxu0 %v39
    %797 = vmatprep.subr.mxu0 0.0
    %798 = vmatpush1.msra.mxu0 %v40
    %799 = vmatprep.subr.mxu0 0.0
    %800 = vmatpush1.msra.mxu0 %v41
    %801 = vmatprep.subr.mxu0 0.0
    %802 = vmatpush1.msra.mxu0 %v42
    %803 = vmatprep.subr.mxu0 0.0
    %804 = vmatpush1.msra.mxu0 0.0
    %805 = vmatprep.subr.mxu0 0.0
    %806 = vmatpush1.msra.mxu0 0.0
    %807 = vmatprep.subr.mxu0 0.0
    %808 = vmatpush1.msra.mxu0 0.0
    %809 = vmatprep.subr.mxu0 0.0
    %810 = vmatpush1.msra.mxu0 0.0
    %811 = vmatprep.subr.mxu0 0.0
    %812 = vmatpush1.msra.mxu0 0.0
    %813 = vmatprep.subr.mxu0 0.0
    %814 = vmatpush1.msra.mxu0 0.0
    %815 = vmatprep.subr.mxu0 0.0
    %816 = vmatpush1.msra.mxu0 0.0
    %817 = vmatprep.subr.mxu0 0.0
    %818 = vmatpush1.msra.mxu0 0.0
    %819 = vmatprep.subr.mxu0 0.0
    %820 = vmatpush1.msra.mxu0 0.0
    %821 = vmatprep.subr.mxu0 0.0
    %822 = vmatpush1.msra.mxu0 0.0
    %823 = vmatprep.subr.mxu0 0.0
    %824 = vmatpush1.msra.mxu0 0.0
    %825 = vmatprep.subr.mxu0 0.0
    %826 = vmatpush1.msra.mxu0 0.0
    %827 = vmatprep.subr.mxu0 0.0
    %828 = vmatpush1.msra.mxu0 0.0
    %829 = vmatprep.subr.mxu0 0.0
    %830 = vmatpush1.msra.mxu0 0.0
    %831 = vmatprep.subr.mxu0 0.0
    %832 = vmatpush1.msra.mxu0 0.0
    %833 = vmatprep.subr.mxu0 0.0
    %834 = vmatpush1.msra.mxu0 0.0
    %835 = vmatprep.subr.mxu0 0.0
    %836 = vmatpush1.msra.mxu0 0.0
    %837 = vmatprep.subr.mxu0 0.0
    %838 = vmatpush1.msra.mxu0 0.0
    %839 = vmatprep.subr.mxu0 0.0
    %840 = vmatpush1.msra.mxu0 0.0
    %841 = vmatprep.subr.mxu0 0.0
    %842 = vmatpush1.msra.mxu0 0.0
    %843 = vmatprep.subr.mxu0 0.0
    %844 = vmatpush1.msra.mxu0 0.0
    %845 = vmatprep.subr.mxu0 0.0
    %846 = vmatpush1.msra.mxu0 0.0
    %847 = vmatprep.subr.mxu0 0.0
    %848 = vmatpush1.msra.mxu0 0.0
    %849 = vmatprep.subr.mxu0 0.0
    %850 = vmatpush1.msra.mxu0 0.0
    %851 = vmatprep.subr.mxu0 0.0
    %852 = vmatpush1.msra.mxu0 0.0
    %853 = vmatprep.subr.mxu0 0.0
    %854 = vmatpush1.msra.mxu0 0.0
    %855 = vmatprep.subr.mxu0 0.0
    %856 = vmatpush1.msra.mxu0 0.0
    %857 = vmatprep.subr.mxu0 0.0
    %858 = vmatpush1.msra.mxu0 0.0
    %859 = vmatprep.mubr.f32.mxu0 0.0
    %860 = vmatmul.mubr.f32.gmra.mrb[0].mxu0 %v793
    %v861 = vpop.f32.mrb[0].mxu0
    %v862 = vadd.f32 %v791, %v861
    %v863 = vpop.f32.mrb[0].mxu0
    %864 = vdwg.mxu0
    %vm865 = vcmask 15360
    %866 = vst.msk [vmem:[%s3] sm:$0xff] %vm865, %v862
    %868 = vrot.lane.b32.xlu0 %v862, 126
    %v869 = vpop.permute.xlu0 %868
    %871 = vst.msk [vmem:[#allocation2] sm:$0xff] %vm52, %v869
    // Predicated region
    $region14: #{tpu_custom_call.1} parent=1 // pred_check
      _
    $region15: #{tpu_custom_call.1} parent=1 // pred_check_branch
      %873 = sbr.rel (0) target = $region17
    $region16: #{tpu_custom_call.1} parent=1 // pred_region
      _
    $region17: #{tpu_custom_call.1} parent=1 // pred_fallthru
      _
    // Predicated region
    $region18: #{tpu_custom_call.1} parent=1 // pred_check
      _
    $region19: #{tpu_custom_call.1} parent=1 // pred_check_branch
      %875 = sbr.rel (0) target = $region21
    $region20: #{tpu_custom_call.1} parent=1 // pred_region
      %s877 = ssub.s32 128, 128
      %878 = vsyncadd [#allocation3], %s877
      %s880 = sshll.u32 [#allocation2], 4
      %s881 = int_to_ptr.vmem [resolvable:$true] %s880
      %883 = dma.vmem_to_hbm [thread:$0]  %s881, 128, %s4, [#allocation3]
    $region21: #{tpu_custom_call.1} parent=1 // pred_fallthru
      _
    // Predicated region
    $region22: #{tpu_custom_call.1} parent=1 // pred_check
      _
    $region23: #{tpu_custom_call.1} parent=1 // pred_check_branch
      %885 = sbr.rel (0) target = $region25
    $region24: #{tpu_custom_call.1} parent=1 // pred_region
      _
    $region25: #{tpu_custom_call.1} parent=1 // pred_fallthru
      _
    // Predicated region
    $region26: #{tpu_custom_call.1} parent=1 // pred_check
      _
    $region27: #{tpu_custom_call.1} parent=1 // pred_check_branch
      %887 = sbr.rel (0) target = $region29
    $region28: #{tpu_custom_call.1} parent=1 // pred_region
      %888 = dma.done [#allocation3], 128
    $region29: #{tpu_custom_call.1} parent=1 // pred_fallthru
      _
    %889 = vsyncpa [#allocation3], 1

</llo_original>
